<compile_context>
chip_gen: v7x
topology: tpu7x:2x2x1
jax: 0.10.0
libtpu: 0.0.40
codegen_flags: <defaults>
</compile_context>

<pallas_src>
import functools

import jax
import jax.numpy as jnp
from jax import lax
from jax.experimental import pallas as pl
from jax.experimental.pallas import tpu as pltpu


# dot_general dimension numbers contracting lhs dim 1 with rhs dim 1
# ("NT" matmul: lhs @ rhs^T) - the standard q @ k^T pattern on Mosaic.
_NT_DIMS = (((1,), (1,)), ((), ()))


def encoder_kernel(x_ref, w1_ref, w2_ref, w3_ref, b_ref, ot_ref, *, compute_dtype):
    # x_ref: (tb, 128)   w1: (20, 128)   w2: (10, 20)   w3: (3, 10)   b: (3, 1)
    # Everything downstream of x is feature-major (batch lives in the lanes).
    x = x_ref[...].astype(compute_dtype)                        # in-register cast only
    h1 = lax.dot_general(w1_ref[...], x, _NT_DIMS,
                         preferred_element_type=jnp.float32)    # (20, tb) lane-dense
    h1 = jnp.maximum(h1, 0.5 * h1)                              # LeakyReLU(0.5)
    h2 = jnp.dot(w2_ref[...], h1.astype(compute_dtype),
                 preferred_element_type=jnp.float32)            # (10, tb)
    h2 = jnp.maximum(h2, 0.5 * h2)
    out = jnp.dot(w3_ref[...], h2.astype(compute_dtype),
                  preferred_element_type=jnp.float32)           # (3, tb)
    ot_ref[...] = (out + b_ref[...]).astype(ot_ref.dtype)       # lane-dense store


def _choose_tile(bs, tile_b):
    if bs <= tile_b:
        return bs                           # single full block (always legal)
    tb = max(128, (tile_b // 128) * 128)    # lane-dense out blocks need tb % 128 == 0
    # Keep >= ~8 grid steps so the megacore split / DMA double-buffer have work,
    # but never drop below 1024 rows (per-step overhead amortization).
    while tb >= 2048 and pl.cdiv(bs, tb) < 8:
        tb //= 2
    return tb


def basic_encoder_forward(x, w1, w2, w3, b, *, tile_b=8192, use_bf16=True):
    """BasicEncoder.forward.

    x: (bs, ...) flattened to (bs, 128) like x.view(bs, -1).
    Weights in PyTorch nn.Linear layout: w1 (20,128), w2 (10,20), w3 (3,10), b (3,).
    Returns (bs, 3) float32.
    """
    bs = x.shape[0]
    x2d = x.reshape(bs, -1)
    assert x2d.shape[1] == 128, f"expected 128 features, got {x2d.shape[1]}"

    compute_dtype = jnp.bfloat16 if use_bf16 else jnp.float32
    # Weights/bias total ~11 KiB: casting them is free and they are DMA'd once.
    w1c = w1.astype(compute_dtype)
    w2c = w2.astype(compute_dtype)
    w3c = w3.astype(compute_dtype)
    bc = b.reshape(3, 1).astype(jnp.float32)

    tb = _choose_tile(bs, tile_b)
    grid = (pl.cdiv(bs, tb),)

    # VMEM budget: double-buffered x tile + out^T tile + f32 intermediates + margin.
    x_tile_bytes = tb * 128 * x2d.dtype.itemsize
    vmem_need = 2 * x_tile_bytes + 2 * 3 * tb * 4 + 2 * (20 + 10) * tb * 4 + (4 << 20)
    vmem_limit = int(min(max(vmem_need, 32 << 20), 100 << 20))

    # Cost model for the *actual* data movement (x stays in its HBM dtype).
    cost = pl.CostEstimate(
        flops=2 * (128 * 20 + 20 * 10 + 10 * 3) * bs,
        transcendentals=0,
        bytes_accessed=bs * (128 * x2d.dtype.itemsize + 3 * 4)
        + (20 * 128 + 10 * 20 + 3 * 10) * w1c.dtype.itemsize + 3 * 4,
    )

    out_t = pl.pallas_call(
        functools.partial(encoder_kernel, compute_dtype=compute_dtype),
        out_shape=jax.ShapeDtypeStruct((3, bs), jnp.float32),
        grid=grid,
        in_specs=[
            pl.BlockSpec((tb, 128), lambda i: (i, 0)),   # x: streamed batch tiles
            pl.BlockSpec((20, 128), lambda i: (0, 0)),   # weights: VMEM-resident
            pl.BlockSpec((10, 20), lambda i: (0, 0)),
            pl.BlockSpec((3, 10), lambda i: (0, 0)),
            pl.BlockSpec((3, 1), lambda i: (0, 0)),      # bias
        ],
        out_specs=pl.BlockSpec((3, tb), lambda i: (0, i)),  # lane-dense out^T tiles
        compiler_params=pltpu.CompilerParams(
            dimension_semantics=("parallel",),           # megacore split on v7x
            vmem_limit_bytes=vmem_limit,
        ),
        cost_estimate=cost,
    )(x2d, w1c, w2c, w3c, bc)

    return out_t.T  # (bs, 3); 12 B/row, negligible vs. the x read


# ----------------------------- reference & demo -----------------------------

def _leaky(h, negative_slope=0.5):
    return jnp.where(h >= 0, h, negative_slope * h)


def reference_forward(x, w1, w2, w3, b):
    bs = x.shape[0]
    h = x.reshape(bs, -1).astype(jnp.float32)
    h = _leaky(h @ w1.T)
    h = _leaky(h @ w2.T)
    return h @ w3.T + b


def init_params(key):
    """Deterministic params mirroring nn.Linear defaults (uniform +/- 1/sqrt(fan_in)),
    stored in the PyTorch (out, in) layout."""
    k1, k2, k3, kb = jax.random.split(key, 4)
    w1 = jax.random.uniform(k1, (20, 128), jnp.float32,
                            minval=-1.0 / jnp.sqrt(128.0), maxval=1.0 / jnp.sqrt(128.0))
    w2 = jax.random.uniform(k2, (10, 20), jnp.float32,
                            minval=-1.0 / jnp.sqrt(20.0), maxval=1.0 / jnp.sqrt(20.0))
    w3 = jax.random.uniform(k3, (3, 10), jnp.float32,
                            minval=-1.0 / jnp.sqrt(10.0), maxval=1.0 / jnp.sqrt(10.0))
    b = jax.random.uniform(kb, (3,), jnp.float32,
                           minval=-1.0 / jnp.sqrt(10.0), maxval=1.0 / jnp.sqrt(10.0))
    return w1, w2, w3, b


if __name__ == "__main__":
    key = jax.random.PRNGKey(0)
    kx, kx2, kp = jax.random.split(key, 3)
    w1, w2, w3, b = init_params(kp)

    # Test 1: batch=2, input presented as (2, 8, 16) -> flattened to (2, 128)
    # like x.view(bs, -1).  Single-block path.
    x = jax.random.normal(kx, (2, 8, 16), dtype=jnp.float32)
    ref = reference_forward(x, w1, w2, w3, b)

    out_f32 = jax.block_until_ready(
        basic_encoder_forward(x, w1, w2, w3, b, use_bf16=False))
    assert out_f32.shape == (2, 3), out_f32.shape
    assert jnp.allclose(out_f32, ref, atol=1e-4, rtol=1e-4), "f32 mismatch vs reference"

    out_bf16 = jax.block_until_ready(
        basic_encoder_forward(x, w1, w2, w3, b, use_bf16=True))
    assert out_bf16.shape == (2, 3), out_bf16.shape
    assert jnp.allclose(out_bf16, ref, atol=5e-2, rtol=5e-2), "bf16 mismatch vs reference"

    # Test 2: multi-step grid with a partial trailing block (300 = 2*128 + 44),
    # exercising the tiled / lane-dense-output path end to end.
    x2 = jax.random.normal(kx2, (300, 128), dtype=jnp.float32)
    ref2 = reference_forward(x2, w1, w2, w3, b)
    out2 = jax.block_until_ready(
        basic_encoder_forward(x2, w1, w2, w3, b, use_bf16=False, tile_b=128))
    assert out2.shape == (300, 3), out2.shape
    assert jnp.allclose(out2, ref2, atol=1e-4, rtol=1e-4), "tiled-path mismatch vs reference"

    print("KERNEL_OK")
</pallas_src>

<mosaic_0001>
module attributes {stable_mosaic.version = 11 : i64} {
  func.func @encoder_kernel(%arg0: i32, %arg1: memref<2x128xf32, #tpu.memory_space<vmem>>, %arg2: memref<20x128xf32, #tpu.memory_space<vmem>>, %arg3: memref<10x20xf32, #tpu.memory_space<vmem>>, %arg4: memref<3x10xf32, #tpu.memory_space<vmem>>, %arg5: memref<3x1xf32, #tpu.memory_space<vmem>>, %arg6: memref<3x2xf32, #tpu.memory_space<vmem>>) attributes {dimension_semantics = [#tpu.dimension_semantics<parallel>], iteration_bounds = array<i64: 1>, scalar_prefetch = 0 : i64, scratch_operands = 0 : i64, tpu.core_type = #tpu.core_type<tc>, window_params = [{transform_indices = @transform_0, window_bounds = array<i64: 2, 128>}, {pipeline_mode = #tpu.pipeline_mode<synchronous>, transform_indices = @transform_1, window_bounds = array<i64: 20, 128>}, {pipeline_mode = #tpu.pipeline_mode<synchronous>, transform_indices = @transform_2, window_bounds = array<i64: 10, 20>}, {pipeline_mode = #tpu.pipeline_mode<synchronous>, transform_indices = @transform_3, window_bounds = array<i64: 3, 10>}, {pipeline_mode = #tpu.pipeline_mode<synchronous>, transform_indices = @transform_4, window_bounds = array<i64: 3, 1>}, {transform_indices = @transform_5, window_bounds = array<i64: 3, 2>}]} {
    %c0 = arith.constant 0 : index
    %c0_0 = arith.constant 0 : index
    %0 = vector.load %arg1[%c0, %c0_0] : memref<2x128xf32, #tpu.memory_space<vmem>>, vector<2x128xf32>
    %c0_1 = arith.constant 0 : index
    %c0_2 = arith.constant 0 : index
    %1 = vector.load %arg2[%c0_1, %c0_2] : memref<20x128xf32, #tpu.memory_space<vmem>>, vector<20x128xf32>
    %cst = arith.constant dense<0.000000e+00> : vector<20x2xf32>
    %2 = tpu.matmul %1, %0, %cst {dimension_numbers = #tpu.dot_dimension_numbers<[1], [1], [0], [0], [0, 0, 1, 0], [], []>} : vector<20x128xf32>, vector<2x128xf32>, vector<20x2xf32> -> vector<20x2xf32>
    %cst_3 = arith.constant 5.000000e-01 : f32
    %3 = vector.broadcast %cst_3 : f32 to vector<20x2xf32>
    %4 = arith.mulf %3, %2 : vector<20x2xf32>
    %5 = arith.maximumf %2, %4 : vector<20x2xf32>
    %c0_4 = arith.constant 0 : index
    %c0_5 = arith.constant 0 : index
    %6 = vector.load %arg3[%c0_4, %c0_5] : memref<10x20xf32, #tpu.memory_space<vmem>>, vector<10x20xf32>
    %cst_6 = arith.constant dense<0.000000e+00> : vector<10x2xf32>
    %7 = tpu.matmul %6, %5, %cst_6 {dimension_numbers = #tpu.dot_dimension_numbers<[1], [0], [0], [1], [0, 0, 1, 1], [], []>} : vector<10x20xf32>, vector<20x2xf32>, vector<10x2xf32> -> vector<10x2xf32>
    %cst_7 = arith.constant 5.000000e-01 : f32
    %8 = vector.broadcast %cst_7 : f32 to vector<10x2xf32>
    %9 = arith.mulf %8, %7 : vector<10x2xf32>
    %10 = arith.maximumf %7, %9 : vector<10x2xf32>
    %c0_8 = arith.constant 0 : index
    %c0_9 = arith.constant 0 : index
    %11 = vector.load %arg4[%c0_8, %c0_9] : memref<3x10xf32, #tpu.memory_space<vmem>>, vector<3x10xf32>
    %cst_10 = arith.constant dense<0.000000e+00> : vector<3x2xf32>
    %12 = tpu.matmul %11, %10, %cst_10 {dimension_numbers = #tpu.dot_dimension_numbers<[1], [0], [0], [1], [0, 0, 1, 1], [], []>} : vector<3x10xf32>, vector<10x2xf32>, vector<3x2xf32> -> vector<3x2xf32>
    %c0_11 = arith.constant 0 : index
    %c0_12 = arith.constant 0 : index
    %13 = vector.load %arg5[%c0_11, %c0_12] : memref<3x1xf32, #tpu.memory_space<vmem>>, vector<3x1xf32>
    %14 = vector.broadcast %13 : vector<3x1xf32> to vector<3x2xf32>
    %15 = arith.addf %12, %14 : vector<3x2xf32>
    %c0_13 = arith.constant 0 : index
    %c0_14 = arith.constant 0 : index
    %16 = vector.load %arg6[%c0_13, %c0_14] : memref<3x2xf32, #tpu.memory_space<vmem>>, vector<3x2xf32>
    tpu.vector_store %arg6[%c0_13, %c0_14], %15 {strides = array<i32>} : memref<3x2xf32, #tpu.memory_space<vmem>>, vector<3x2xf32>,
    return
  }
  func.func @transform_0(%arg0: i32) -> (i32, i32) {
    %c0_i32 = arith.constant 0 : i32
    %c0_i32_0 = arith.constant 0 : i32
    return %arg0, %c0_i32 : i32, i32
  }
  func.func @transform_1(%arg0: i32) -> (i32, i32) {
    %c0_i32 = arith.constant 0 : i32
    %c0_i32_0 = arith.constant 0 : i32
    %c0_i32_1 = arith.constant 0 : i32
    return %c0_i32, %c0_i32_0 : i32, i32
  }
  func.func @transform_2(%arg0: i32) -> (i32, i32) {
    %c0_i32 = arith.constant 0 : i32
    %c0_i32_0 = arith.constant 0 : i32
    %c0_i32_1 = arith.constant 0 : i32
    return %c0_i32, %c0_i32_0 : i32, i32
  }
  func.func @transform_3(%arg0: i32) -> (i32, i32) {
    %c0_i32 = arith.constant 0 : i32
    %c0_i32_0 = arith.constant 0 : i32
    %c0_i32_1 = arith.constant 0 : i32
    return %c0_i32, %c0_i32_0 : i32, i32
  }
  func.func @transform_4(%arg0: i32) -> (i32, i32) {
    %c0_i32 = arith.constant 0 : i32
    %c0_i32_0 = arith.constant 0 : i32
    %c0_i32_1 = arith.constant 0 : i32
    return %c0_i32, %c0_i32_0 : i32, i32
  }
  func.func @transform_5(%arg0: i32) -> (i32, i32) {
    %c0_i32 = arith.constant 0 : i32
    %c0_i32_0 = arith.constant 0 : i32
    return %c0_i32, %arg0 : i32, i32
  }
}

</mosaic_0001>

<llo_original>
// kernel: tpu_custom_call.1
$region0: #{tpu_custom_call.1}
  #allocation0 [shape = 'u32[]', space=smem, size = 0x4, offset = 0x4, fixed_abs, tag = 'smem constant byte address 0x4 - core index']
  #allocation1 [shape = 'u32[144,128]{1,0:T(1,128)}', space=vmem, size = 0x12000, scoped, tag = 'internal scratch']
  %s0 = inlined_call_operand.vmem [shape: f32[2,128], index: 0, kind: input, shape index: {}]
  %s1 = inlined_call_operand.hbm [shape: f32[20,128], index: 1, kind: input, shape index: {}]
  %s2 = inlined_call_operand.hbm [shape: f32[10,20], index: 2, kind: input, shape index: {}]
  %s3 = inlined_call_operand.vmem [shape: f32[3,10], index: 3, kind: input, shape index: {}]
  %s4 = inlined_call_operand.vmem [shape: f32[3,1], index: 4, kind: input, shape index: {}]
  %s5 = inlined_call_operand.vmem [shape: f32[3,2], index: 5, kind: output, shape index: {}]
  %s6 = sld [smem:[#allocation0]]
  $region38: #{tpu_custom_call.1} parent=0
    _
  %s8 = ssub.s32 1, %s6
  %s9 = scalar_select 0, %s8, %s6
  $region1: #{tpu_custom_call.1} parent=0
    #allocation2 [shape = 'u8[12288]{0}', space=vmem, size = 0x3000, scoped, tag = 'input window, operand 1, single buffered']
    #allocation3 [shape = 's32[1]{0}', space=sflag, size = 0x4, scoped, tag = 'scoped memory for tpu_custom_call.1']
    #allocation4 [shape = 'u8[8192]{0}', space=vmem, size = 0x2000, scoped, tag = 'input window, operand 2, single buffered']
    #allocation5 [shape = 's32[1]{0}', space=sflag, size = 0x4, scoped, tag = 'scoped memory for tpu_custom_call.1']
    %10 = vsyncpa [#allocation3], 0
    %11 = vsyncpa [#allocation5], 0
    // Predicated region
    $region2: #{tpu_custom_call.1} parent=1 // pred_check
      _
    $region3: #{tpu_custom_call.1} parent=1 // pred_check_branch
      %13 = sbr.rel (0) target = $region5
    $region4: #{tpu_custom_call.1} parent=1 // pred_region
      _
    $region5: #{tpu_custom_call.1} parent=1 // pred_fallthru
      _
    // Predicated region
    $region6: #{tpu_custom_call.1} parent=1 // pred_check
      _
    $region7: #{tpu_custom_call.1} parent=1 // pred_check_branch
      %15 = sbr.rel (0) target = $region9
    $region8: #{tpu_custom_call.1} parent=1 // pred_region
      %s17 = ssub.s32 384, 384
      %18 = vsyncadd [#allocation3], %s17
      %s19 = sshll.u32 [#allocation2], 4
      %s20 = int_to_ptr.vmem [resolvable:$true] %s19
      %25 = dma.hbm_to_vmem [thread:$0]  %s1, 384, %s20, [#allocation3], 128, 128, 8
    $region9: #{tpu_custom_call.1} parent=1 // pred_fallthru
      _
    // Predicated region
    $region10: #{tpu_custom_call.1} parent=1 // pred_check
      _
    $region11: #{tpu_custom_call.1} parent=1 // pred_check_branch
      %27 = sbr.rel (0) target = $region13
    $region12: #{tpu_custom_call.1} parent=1 // pred_region
      %s29 = ssub.s32 256, 256
      %30 = vsyncadd [#allocation5], %s29
      %s31 = sshll.u32 [#allocation4], 4
      %s32 = int_to_ptr.vmem [resolvable:$true] %s31
      %37 = dma.hbm_to_vmem [thread:$0]  %s2, 256, %s32, [#allocation5], 128, 128, 8
    $region13: #{tpu_custom_call.1} parent=1 // pred_fallthru
      _
    // Predicated region
    $region14: #{tpu_custom_call.1} parent=1 // pred_check
      _
    $region15: #{tpu_custom_call.1} parent=1 // pred_check_branch
      %39 = sbr.rel (0) target = $region17
    $region16: #{tpu_custom_call.1} parent=1 // pred_region
      _
    $region17: #{tpu_custom_call.1} parent=1 // pred_fallthru
      _
    // Predicated region
    $region18: #{tpu_custom_call.1} parent=1 // pred_check
      _
    $region19: #{tpu_custom_call.1} parent=1 // pred_check_branch
      %41 = sbr.rel (0) target = $region21
    $region20: #{tpu_custom_call.1} parent=1 // pred_region
      _
    $region21: #{tpu_custom_call.1} parent=1 // pred_fallthru
      _
    // Predicated region
    $region22: #{tpu_custom_call.1} parent=1 // pred_check
      _
    $region23: #{tpu_custom_call.1} parent=1 // pred_check_branch
      %43 = sbr.rel (0) target = $region25
    $region24: #{tpu_custom_call.1} parent=1 // pred_region
      %44 = dma.done [#allocation3], 384
    $region25: #{tpu_custom_call.1} parent=1 // pred_fallthru
      _
    // Predicated region
    $region26: #{tpu_custom_call.1} parent=1 // pred_check
      _
    $region27: #{tpu_custom_call.1} parent=1 // pred_check_branch
      %46 = sbr.rel (0) target = $region29
    $region28: #{tpu_custom_call.1} parent=1 // pred_region
      %47 = dma.done [#allocation5], 256
    $region29: #{tpu_custom_call.1} parent=1 // pred_fallthru
      _
    %v48 = vld [vmem:[%s0] sm:$0x3]
    %v49 = vld [vmem:[#allocation2] sm:$0xff]
    %v50 = vld [vmem:[#allocation2 + $0x8] sm:$0xff]
    %v51 = vld [vmem:[#allocation2 + $0x10] sm:$0xf]
    %52 = vmatprep.subr.mxu0 0.0
    %53 = vmatpush1.xpose.msra.mxu0 %v48
    %54 = vmatprep.subr.mxu0 0.0
    %55 = vmatpush1.xpose.msra.mxu0 0.0
    %56 = vmatprep.subr.mxu0 0.0
    %57 = vmatpush1.xpose.msra.mxu0 0.0
    %58 = vmatprep.subr.mxu0 0.0
    %59 = vmatpush1.xpose.msra.mxu0 0.0
    %60 = vmatprep.subr.mxu0 0.0
    %61 = vmatpush1.xpose.msra.mxu0 0.0
    %62 = vmatprep.subr.mxu0 0.0
    %63 = vmatpush1.xpose.msra.mxu0 0.0
    %64 = vmatprep.subr.mxu0 0.0
    %65 = vmatpush1.xpose.msra.mxu0 0.0
    %66 = vmatprep.subr.mxu0 0.0
    %67 = vmatpush1.xpose.msra.mxu0 0.0
    %68 = vmatprep.subr.mxu0 0.0
    %69 = vmatpush1.xpose.msra.mxu0 0.0
    %70 = vmatprep.subr.mxu0 0.0
    %71 = vmatpush1.xpose.msra.mxu0 0.0
    %72 = vmatprep.subr.mxu0 0.0
    %73 = vmatpush1.xpose.msra.mxu0 0.0
    %74 = vmatprep.subr.mxu0 0.0
    %75 = vmatpush1.xpose.msra.mxu0 0.0
    %76 = vmatprep.subr.mxu0 0.0
    %77 = vmatpush1.xpose.msra.mxu0 0.0
    %78 = vmatprep.subr.mxu0 0.0
    %79 = vmatpush1.xpose.msra.mxu0 0.0
    %80 = vmatprep.subr.mxu0 0.0
    %81 = vmatpush1.xpose.msra.mxu0 0.0
    %82 = vmatprep.subr.mxu0 0.0
    %83 = vmatpush1.xpose.msra.mxu0 0.0
    %84 = vmatprep.subr.mxu0 0.0
    %85 = vmatpush1.xpose.msra.mxu0 0.0
    %86 = vmatprep.subr.mxu0 0.0
    %87 = vmatpush1.xpose.msra.mxu0 0.0
    %88 = vmatprep.subr.mxu0 0.0
    %89 = vmatpush1.xpose.msra.mxu0 0.0
    %90 = vmatprep.subr.mxu0 0.0
    %91 = vmatpush1.xpose.msra.mxu0 0.0
    %92 = vmatprep.subr.mxu0 0.0
    %93 = vmatpush1.xpose.msra.mxu0 0.0
    %94 = vmatprep.subr.mxu0 0.0
    %95 = vmatpush1.xpose.msra.mxu0 0.0
    %96 = vmatprep.subr.mxu0 0.0
    %97 = vmatpush1.xpose.msra.mxu0 0.0
    %98 = vmatprep.subr.mxu0 0.0
    %99 = vmatpush1.xpose.msra.mxu0 0.0
    %100 = vmatprep.subr.mxu0 0.0
    %101 = vmatpush1.xpose.msra.mxu0 0.0
    %102 = vmatprep.subr.mxu0 0.0
    %103 = vmatpush1.xpose.msra.mxu0 0.0
    %104 = vmatprep.subr.mxu0 0.0
    %105 = vmatpush1.xpose.msra.mxu0 0.0
    %106 = vmatprep.subr.mxu0 0.0
    %107 = vmatpush1.xpose.msra.mxu0 0.0
    %108 = vmatprep.subr.mxu0 0.0
    %109 = vmatpush1.xpose.msra.mxu0 0.0
    %110 = vmatprep.subr.mxu0 0.0
    %111 = vmatpush1.xpose.msra.mxu0 0.0
    %112 = vmatprep.subr.mxu0 0.0
    %113 = vmatpush1.xpose.msra.mxu0 0.0
    %114 = vmatprep.subr.mxu0 0.0
    %115 = vmatpush1.xpose.msra.mxu0 0.0
    %116 = vmatprep.mubr.f32.mxu0 0.0
    %117 = vmatmul.mubr.f32.gmra.mrb[0].mxu0 %v49
    %v118 = vpop.f32.mrb[0].mxu0
    %v119 = vadd.f32 0.0, %v118
    %v120 = vpop.f32.mrb[0].mxu0
    %121 = vmatprep.mubr.f32.mxu0 0.0
    %122 = vmatmul.mubr.f32.gmra.mrb[0].mxu0 %v50
    %v123 = vpop.f32.mrb[0].mxu0
    %v124 = vadd.f32 0.0, %v123
    %v125 = vpop.f32.mrb[0].mxu0
    %126 = vmatprep.mubr.f32.mxu0 0.0
    %127 = vmatmul.mubr.f32.gmra.mrb[0].mxu0 %v51
    %v128 = vpop.f32.mrb[0].mxu0
    %v129 = vadd.f32 0.0, %v128
    %v130 = vpop.f32.mrb[0].mxu0
    %131 = vdwg.mxu0
    %v132 = vmul.f32 %v119, 0.5
    %v133 = vmul.f32 %v124, 0.5
    %v134 = vmul.f32 %v129, 0.5
    %v135 = vmax.f32 %v119, %v132
    %v136 = vmax.f32 %v124, %v133
    %v137 = vmax.f32 %v129, %v134
    %v138 = vld [vmem:[#allocation4] sm:$0xff]
    %v139 = vld [vmem:[#allocation4 + $0x8] sm:$0x3]
    %vm140 = vcmask 162816
    %v142 = vsel %vm140, %v138, 0
    %v145 = vsel %vm140, %v139, 0
    %vm147 = vcmask 1043456
    %v149 = vsel %vm147, %v137, 0
    %151 = vmatprep.subr.mxu0 0.0
    %152 = vmatpush1.msra.mxu0 %v135
    %153 = vmatprep.subr.mxu0 0.0
    %154 = vmatpush1.msra.mxu0 %v136
    %155 = vmatprep.subr.mxu0 0.0
    %156 = vmatpush1.msra.mxu0 %v149
    %157 = vmatprep.subr.mxu0 0.0
    %158 = vmatpush1.msra.mxu0 0.0
    %159 = vmatprep.subr.mxu0 0.0
    %160 = vmatpush1.msra.mxu0 0.0
    %161 = vmatprep.subr.mxu0 0.0
    %162 = vmatpush1.msra.mxu0 0.0
    %163 = vmatprep.subr.mxu0 0.0
    %164 = vmatpush1.msra.mxu0 0.0
    %165 = vmatprep.subr.mxu0 0.0
    %166 = vmatpush1.msra.mxu0 0.0
    %167 = vmatprep.subr.mxu0 0.0
    %168 = vmatpush1.msra.mxu0 0.0
    %169 = vmatprep.subr.mxu0 0.0
    %170 = vmatpush1.msra.mxu0 0.0
    %171 = vmatprep.subr.mxu0 0.0
    %172 = vmatpush1.msra.mxu0 0.0
    %173 = vmatprep.subr.mxu0 0.0
    %174 = vmatpush1.msra.mxu0 0.0
    %175 = vmatprep.subr.mxu0 0.0
    %176 = vmatpush1.msra.mxu0 0.0
    %177 = vmatprep.subr.mxu0 0.0
    %178 = vmatpush1.msra.mxu0 0.0
    %179 = vmatprep.subr.mxu0 0.0
    %180 = vmatpush1.msra.mxu0 0.0
    %181 = vmatprep.subr.mxu0 0.0
    %182 = vmatpush1.msra.mxu0 0.0
    %183 = vmatprep.subr.mxu0 0.0
    %184 = vmatpush1.msra.mxu0 0.0
    %185 = vmatprep.subr.mxu0 0.0
    %186 = vmatpush1.msra.mxu0 0.0
    %187 = vmatprep.subr.mxu0 0.0
    %188 = vmatpush1.msra.mxu0 0.0
    %189 = vmatprep.subr.mxu0 0.0
    %190 = vmatpush1.msra.mxu0 0.0
    %191 = vmatprep.subr.mxu0 0.0
    %192 = vmatpush1.msra.mxu0 0.0
    %193 = vmatprep.subr.mxu0 0.0
    %194 = vmatpush1.msra.mxu0 0.0
    %195 = vmatprep.subr.mxu0 0.0
    %196 = vmatpush1.msra.mxu0 0.0
    %197 = vmatprep.subr.mxu0 0.0
    %198 = vmatpush1.msra.mxu0 0.0
    %199 = vmatprep.subr.mxu0 0.0
    %200 = vmatpush1.msra.mxu0 0.0
    %201 = vmatprep.subr.mxu0 0.0
    %202 = vmatpush1.msra.mxu0 0.0
    %203 = vmatprep.subr.mxu0 0.0
    %204 = vmatpush1.msra.mxu0 0.0
    %205 = vmatprep.subr.mxu0 0.0
    %206 = vmatpush1.msra.mxu0 0.0
    %207 = vmatprep.subr.mxu0 0.0
    %208 = vmatpush1.msra.mxu0 0.0
    %209 = vmatprep.subr.mxu0 0.0
    %210 = vmatpush1.msra.mxu0 0.0
    %211 = vmatprep.subr.mxu0 0.0
    %212 = vmatpush1.msra.mxu0 0.0
    %213 = vmatprep.subr.mxu0 0.0
    %214 = vmatpush1.msra.mxu0 0.0
    %215 = vmatprep.mubr.f32.mxu0 0.0
    %216 = vmatmul.mubr.f32.gmra.mrb[0].mxu0 %v142
    %v217 = vpop.f32.mrb[0].mxu0
    %v218 = vadd.f32 0.0, %v217
    %v219 = vpop.f32.mrb[0].mxu0
    %220 = vmatprep.mubr.f32.mxu0 0.0
    %221 = vmatmul.mubr.f32.gmra.mrb[0].mxu0 %v145
    %v222 = vpop.f32.mrb[0].mxu0
    %v223 = vadd.f32 0.0, %v222
    %v224 = vpop.f32.mrb[0].mxu0
    %225 = vdwg.mxu0
    %v226 = vmul.f32 %v218, 0.5
    %v227 = vmul.f32 %v223, 0.5
    %v228 = vmax.f32 %v218, %v226
    %v229 = vmax.f32 %v223, %v227
    %v230 = vld [vmem:[%s3] sm:$0x7]
    %v231 = vld [vmem:[%s4] sm:$0x7]
    %233 = vset.pattern.permute.xlu0 0
    %234 = vperm.xlu0 %233, %v231
    %v235 = vpop.permute.xlu0 %234
    %vm237 = vcmask 80896
    %v239 = vsel %vm237, %v230, 0
    %vm241 = vcmask 1041408
    %v243 = vsel %vm241, %v229, 0
    %245 = vmatprep.subr.mxu0 0.0
    %246 = vmatpush1.msra.mxu0 %v228
    %247 = vmatprep.subr.mxu0 0.0
    %248 = vmatpush1.msra.mxu0 %v243
    %249 = vmatprep.subr.mxu0 0.0
    %250 = vmatpush1.msra.mxu0 0.0
    %251 = vmatprep.subr.mxu0 0.0
    %252 = vmatpush1.msra.mxu0 0.0
    %253 = vmatprep.subr.mxu0 0.0
    %254 = vmatpush1.msra.mxu0 0.0
    %255 = vmatprep.subr.mxu0 0.0
    %256 = vmatpush1.msra.mxu0 0.0
    %257 = vmatprep.subr.mxu0 0.0
    %258 = vmatpush1.msra.mxu0 0.0
    %259 = vmatprep.subr.mxu0 0.0
    %260 = vmatpush1.msra.mxu0 0.0
    %261 = vmatprep.subr.mxu0 0.0
    %262 = vmatpush1.msra.mxu0 0.0
    %263 = vmatprep.subr.mxu0 0.0
    %264 = vmatpush1.msra.mxu0 0.0
    %265 = vmatprep.subr.mxu0 0.0
    %266 = vmatpush1.msra.mxu0 0.0
    %267 = vmatprep.subr.mxu0 0.0
    %268 = vmatpush1.msra.mxu0 0.0
    %269 = vmatprep.subr.mxu0 0.0
    %270 = vmatpush1.msra.mxu0 0.0
    %271 = vmatprep.subr.mxu0 0.0
    %272 = vmatpush1.msra.mxu0 0.0
    %273 = vmatprep.subr.mxu0 0.0
    %274 = vmatpush1.msra.mxu0 0.0
    %275 = vmatprep.subr.mxu0 0.0
    %276 = vmatpush1.msra.mxu0 0.0
    %277 = vmatprep.subr.mxu0 0.0
    %278 = vmatpush1.msra.mxu0 0.0
    %279 = vmatprep.subr.mxu0 0.0
    %280 = vmatpush1.msra.mxu0 0.0
    %281 = vmatprep.subr.mxu0 0.0
    %282 = vmatpush1.msra.mxu0 0.0
    %283 = vmatprep.subr.mxu0 0.0
    %284 = vmatpush1.msra.mxu0 0.0
    %285 = vmatprep.subr.mxu0 0.0
    %286 = vmatpush1.msra.mxu0 0.0
    %287 = vmatprep.subr.mxu0 0.0
    %288 = vmatpush1.msra.mxu0 0.0
    %289 = vmatprep.subr.mxu0 0.0
    %290 = vmatpush1.msra.mxu0 0.0
    %291 = vmatprep.subr.mxu0 0.0
    %292 = vmatpush1.msra.mxu0 0.0
    %293 = vmatprep.subr.mxu0 0.0
    %294 = vmatpush1.msra.mxu0 0.0
    %295 = vmatprep.subr.mxu0 0.0
    %296 = vmatpush1.msra.mxu0 0.0
    %297 = vmatprep.subr.mxu0 0.0
    %298 = vmatpush1.msra.mxu0 0.0
    %299 = vmatprep.subr.mxu0 0.0
    %300 = vmatpush1.msra.mxu0 0.0
    %301 = vmatprep.subr.mxu0 0.0
    %302 = vmatpush1.msra.mxu0 0.0
    %303 = vmatprep.subr.mxu0 0.0
    %304 = vmatpush1.msra.mxu0 0.0
    %305 = vmatprep.subr.mxu0 0.0
    %306 = vmatpush1.msra.mxu0 0.0
    %307 = vmatprep.subr.mxu0 0.0
    %308 = vmatpush1.msra.mxu0 0.0
    %309 = vmatprep.mubr.f32.mxu0 0.0
    %310 = vmatmul.mubr.f32.gmra.mrb[0].mxu0 %v239
    %v311 = vpop.f32.mrb[0].mxu0
    %v312 = vadd.f32 %v235, %v311
    %v313 = vpop.f32.mrb[0].mxu0
    %314 = vdwg.mxu0
    %vm315 = vcmask 10240
    %316 = vst.msk [vmem:[%s5] sm:$0x7] %vm315, %v312
    // Predicated region
    $region30: #{tpu_custom_call.1} parent=1 // pred_check
      _
    $region31: #{tpu_custom_call.1} parent=1 // pred_check_branch
      %318 = sbr.rel (0) target = $region33
    $region32: #{tpu_custom_call.1} parent=1 // pred_region
      _
    $region33: #{tpu_custom_call.1} parent=1 // pred_fallthru
      _
    // Predicated region
    $region34: #{tpu_custom_call.1} parent=1 // pred_check
      _
    $region35: #{tpu_custom_call.1} parent=1 // pred_check_branch
      %320 = sbr.rel (0) target = $region37
    $region36: #{tpu_custom_call.1} parent=1 // pred_region
      _
    $region37: #{tpu_custom_call.1} parent=1 // pred_fallthru
      _
    %321 = vsyncpa [#allocation3], 1
    %322 = vsyncpa [#allocation5], 1

</llo_original>
